<compile_context>
chip_gen: v6e
topology: v6e:2x2x1
jax: 0.10.0
libtpu: 0.0.40
codegen_flags: <defaults>
</compile_context>

<pallas_src>
import jax
import jax.numpy as jnp
from jax.experimental import pallas as pl
from jax.experimental.pallas import tpu as pltpu


# ---------------------------------------------------------------------------
# In-kernel helpers
# ---------------------------------------------------------------------------
def _layernorm(x, gamma, beta, eps=1e-5):
    # Single-pass statistics: one lane reduction pair, no second full-width
    # subtract on the critical path (PyTorch LayerNorm: biased var, eps inside rsqrt).
    mu = jnp.mean(x, axis=-1, keepdims=True)
    mu2 = jnp.mean(x * x, axis=-1, keepdims=True)
    var = jnp.maximum(mu2 - mu * mu, 0.0)
    return (x - mu) * jax.lax.rsqrt(var + eps) * gamma + beta


def _gelu(x):
    # tanh-approximate GELU -> EUP (separate VLIW slot). Tiny numerics delta vs
    # PyTorch nn.GELU() exact erf; validated against the same approximation below.
    return jax.nn.gelu(x, approximate=True)


# ---------------------------------------------------------------------------
# Pallas kernel: the whole gMLP stack.
# grid = (batch_blocks, n_layers); activations live in o_ref across layers.
# ---------------------------------------------------------------------------
def _gmlp_stack_kernel(x_ref, pp_ref, b1_ref, w0_ref, w1_ref, w2_ref, o_ref):
    layer = pl.program_id(1)

    # Seed the VMEM-resident activation block from the HBM input on layer 0.
    @pl.when(layer == 0)
    def _():
        o_ref[...] = x_ref[...]

    Bt, L, D = o_ref.shape
    H = w0_ref.shape[-1]
    H2 = H // 2

    # Unpack the single packed small-param slab (one DMA instead of six).
    pp = pp_ref[0]                        # (8, P) f32
    g0, be0 = pp[0, :D], pp[1, :D]
    b0 = pp[2, :H]
    g1, be1 = pp[3, :H2], pp[4, :H2]
    b2 = pp[5, :D]
    b1_col = b1_ref[0, :, 0:1]            # (L, 1) f32 from the lane-dense slab

    x = o_ref[...].astype(jnp.float32)    # (Bt, L, D) resident activations
    x2 = x.reshape(Bt * L, D)             # flatten -> bigger MXU M dim

    # --- ln0 -> linear0 (bf16 MXU, f32 acc) -> GELU(tanh) --------------------
    xn = _layernorm(x2, g0, be0)
    h = jnp.dot(xn.astype(jnp.bfloat16), w0_ref[0],
                preferred_element_type=jnp.float32) + b0        # (Bt*L, H)
    h = _gelu(h)

    u3 = h[:, :H2].reshape(Bt, L, H2)      # (Bt, L, H/2) f32
    v = h[:, H2:]                          # (Bt*L, H/2) f32

    # --- ln1 -> spatial gating: one batched contraction, bias added once -----
    vn3 = _layernorm(v, g1, be1).astype(jnp.bfloat16).reshape(Bt, L, H2)
    w1b = jnp.broadcast_to(w1_ref[0][None], (Bt, L, L))          # bf16
    vg = jnp.einsum("blk,bkh->blh", w1b, vn3,
                    preferred_element_type=jnp.float32) + b1_col  # (Bt, L, H/2)
    gated = (u3 * vg).reshape(Bt * L, H2)

    # --- linear2 (bf16 MXU, f32 acc) + residual -------------------------------
    out = jnp.dot(gated.astype(jnp.bfloat16), w2_ref[0],
                  preferred_element_type=jnp.float32) + b2       # (Bt*L, D)
    o_ref[...] = (out + x2).reshape(Bt, L, D).astype(o_ref.dtype)


# ---------------------------------------------------------------------------
# Generation-aware sizing
# ---------------------------------------------------------------------------
def _vmem_capacity_bytes():
    try:
        return int(pltpu.get_tpu_info().vmem_capacity_bytes)
    except Exception:
        return 64 * 1024 * 1024            # conservative (v7x per-TensorCore)


def _pick_batch_block(B, L, D, H, vmem_capacity):
    """Largest divisor of B, capped at B//2 (so the 'parallel' batch axis has
    extent >= 2 and can shard across v7x's two TensorCores), that keeps a rough
    VMEM estimate under ~70% of capacity; stop growing once the flattened
    matmul M = Bt*L reaches a generation-aware target."""
    H2 = H // 2
    P = max(D, H, L)
    budget = int(vmem_capacity * 0.70)
    m_target = 512 if vmem_capacity >= (96 << 20) else 256
    # Per-layer-step fixed cost: double-buffered bf16 weights + f32 param slabs.
    fixed = 2 * 2 * (D * H + L * L + H2 * D) + 2 * 4 * (8 * P + L * 128)
    cap = max(1, B // 2)
    best = 1
    for bt in range(1, cap + 1):
        if B % bt:
            continue
        act_blocks = 2 * 2 * 4 * bt * L * D                      # x + o blocks, 2-buffered
        live = 4 * bt * L * (3 * D + 2 * H + 4 * H2) + 2 * bt * L * L
        if fixed + act_blocks + live > budget:
            break
        best = bt
        if bt * L >= m_target:
            break
    return best


# ---------------------------------------------------------------------------
# Wrapper
# ---------------------------------------------------------------------------
def gmlp_stack(x, layer_params, *, batch_block=None):
    """x: (B, L, D) float32. layer_params: list of per-layer param dicts."""
    B, L, D = x.shape
    NL = len(layer_params)
    H = layer_params[0]["w0"].shape[0]
    H2 = H // 2
    P = max(D, H, L)

    vmem_cap = _vmem_capacity_bytes()
    if batch_block is None:
        batch_block = _pick_batch_block(B, L, D, H, vmem_cap)
    assert B % batch_block == 0
    nb = B // batch_block

    f32, bf16 = jnp.float32, jnp.bfloat16
    stack = lambda k: jnp.stack([p[k] for p in layer_params])

    # Stacked, pre-transposed bf16 weights (glue in plain JAX).
    w0_t = jnp.transpose(stack("w0"), (0, 2, 1)).astype(bf16)    # (NL, D, H)
    w2_t = jnp.transpose(stack("w2"), (0, 2, 1)).astype(bf16)    # (NL, H2, D)
    w1 = stack("w1").astype(bf16)                                # (NL, L, L)

    # Six small per-layer vectors packed into one (NL, 8, P) f32 slab.
    def row(key, width):
        a = stack(key).astype(f32).reshape(NL, width)
        return jnp.pad(a, ((0, 0), (0, P - width)))
    zeros = jnp.zeros((NL, P), f32)
    pp = jnp.stack([row("ln0_w", D), row("ln0_b", D), row("b0", H),
                    row("ln1_w", H2), row("ln1_b", H2), row("b2", D),
                    zeros, zeros], axis=1)                       # (NL, 8, P)

    # Gating bias: lane-dense replicated slab (sublane-broadcast source).
    b1 = jnp.broadcast_to(stack("b1").reshape(NL, L, 1), (NL, L, 128)).astype(f32)

    wspec = lambda shape: pl.BlockSpec((1,) + shape, lambda b, l: (l, 0, 0))
    vmem_limit = max(32 << 20, min(int(vmem_cap) * 3 // 4, 100 << 20))

    return pl.pallas_call(
        _gmlp_stack_kernel,
        out_shape=jax.ShapeDtypeStruct((B, L, D), x.dtype),
        grid_spec=pltpu.PrefetchScalarGridSpec(
            num_scalar_prefetch=0,
            grid=(nb, NL),
            in_specs=[
                pl.BlockSpec((batch_block, L, D), lambda b, l: (b, 0, 0)),  # x
                wspec((8, P)),       # packed small params (f32)
                wspec((L, 128)),     # b1 lane-replicated (f32)
                wspec((D, H)),       # w0^T  (bf16)
                wspec((L, L)),       # w1    (bf16)
                wspec((H2, D)),      # w2^T  (bf16)
            ],
            # Same block index across the layer axis -> VMEM-resident activations.
            out_specs=pl.BlockSpec((batch_block, L, D), lambda b, l: (b, 0, 0)),
        ),
        compiler_params=pltpu.CompilerParams(
            dimension_semantics=("parallel", "arbitrary"),
            vmem_limit_bytes=vmem_limit,
        ),
    )(x, pp, b1, w0_t, w1, w2_t)


# ---------------------------------------------------------------------------
# Deterministic parameter init (mirrors PyTorch init shapes / distributions)
# ---------------------------------------------------------------------------
def init_params(key, seq_len, seq_dim, hidden_dim, n_layers):
    layers = []
    h2 = hidden_dim // 2
    for _ in range(n_layers):
        key, k0, k1, k2, k3, k4 = jax.random.split(key, 6)
        bound0 = 1.0 / (seq_dim ** 0.5)
        bound2 = 1.0 / (h2 ** 0.5)
        std1 = 0.01 * (2.0 / (seq_len + seq_len)) ** 0.5   # xavier_normal, gain=0.01
        layers.append(dict(
            ln0_w=jnp.ones((seq_dim,), jnp.float32),
            ln0_b=jnp.zeros((seq_dim,), jnp.float32),
            ln1_w=jnp.ones((h2,), jnp.float32),
            ln1_b=jnp.zeros((h2,), jnp.float32),
            w0=jax.random.uniform(k0, (hidden_dim, seq_dim), jnp.float32,
                                  -bound0, bound0),
            b0=jax.random.uniform(k1, (hidden_dim,), jnp.float32, -bound0, bound0),
            w1=std1 * jax.random.normal(k2, (seq_len, seq_len), jnp.float32),
            b1=jnp.ones((seq_len,), jnp.float32),            # init.ones_(linear1.bias)
            w2=jax.random.uniform(k3, (seq_dim, h2), jnp.float32, -bound2, bound2),
            b2=jax.random.uniform(k4, (seq_dim,), jnp.float32, -bound2, bound2),
        ))
    return layers


# ---------------------------------------------------------------------------
# Pure-JAX reference with the SAME bf16-operand / f32-accumulate matmuls and
# the same tanh GELU (so the check validates kernel structure, not rounding).
# ---------------------------------------------------------------------------
def _ref_layer(x, p):
    bf16 = jnp.bfloat16
    xn = _layernorm(x, p["ln0_w"], p["ln0_b"])
    h = jnp.dot(xn.astype(bf16), p["w0"].T.astype(bf16),
                preferred_element_type=jnp.float32) + p["b0"]
    h = _gelu(h)
    u, v = jnp.split(h, 2, axis=-1)
    vn = _layernorm(v, p["ln1_w"], p["ln1_b"])
    vg = jnp.einsum("lk,bkh->blh", p["w1"].astype(bf16), vn.astype(bf16),
                    preferred_element_type=jnp.float32) + p["b1"][None, :, None]
    out = jnp.dot((u * vg).astype(bf16), p["w2"].T.astype(bf16),
                  preferred_element_type=jnp.float32) + p["b2"]
    return out + x


def _ref_stack(x, layer_params):
    for p in layer_params:
        x = _ref_layer(x, p)
    return x


# ---------------------------------------------------------------------------
if __name__ == "__main__":
    B, L, D, H, NLAYERS = 2, 8, 16, 32, 2   # batch, seq_len, seq_dim, hidden_dim

    key = jax.random.PRNGKey(0)
    key, kx = jax.random.split(key)
    x = jax.random.normal(kx, (B, L, D), dtype=jnp.float32)
    params = init_params(key, seq_len=L, seq_dim=D, hidden_dim=H, n_layers=NLAYERS)

    out = jax.block_until_ready(gmlp_stack(x, params))

    ref = _ref_stack(x, params)
    assert out.shape == (B, L, D)
    max_err = float(jnp.max(jnp.abs(out - ref)))
    assert jnp.allclose(out, ref, atol=2e-3, rtol=2e-3), \
        f"mismatch vs JAX reference (max abs err {max_err})"

    print("KERNEL_OK")
</pallas_src>

<mosaic_0001>
module attributes {stable_mosaic.version = 11 : i64} {
  func.func @_gmlp_stack_kernel(%arg0: i32, %arg1: i32, %arg2: memref<1x8x16xf32, #tpu.memory_space<vmem>>, %arg3: memref<1x8x32xf32, #tpu.memory_space<vmem>>, %arg4: memref<1x8x128xf32, #tpu.memory_space<vmem>>, %arg5: memref<1x16x32xbf16, #tpu.memory_space<vmem>>, %arg6: memref<1x8x8xbf16, #tpu.memory_space<vmem>>, %arg7: memref<1x16x16xbf16, #tpu.memory_space<vmem>>, %arg8: memref<1x8x16xf32, #tpu.memory_space<vmem>>) attributes {dimension_semantics = [#tpu.dimension_semantics<parallel>, #tpu.dimension_semantics<arbitrary>], iteration_bounds = array<i64: 2, 2>, scalar_prefetch = 0 : i64, scratch_operands = 0 : i64, tpu.core_type = #tpu.core_type<tc>, window_params = [{transform_indices = @transform_0, window_bounds = array<i64: 1, 8, 16>}, {transform_indices = @transform_1, window_bounds = array<i64: 1, 8, 32>}, {transform_indices = @transform_2, window_bounds = array<i64: 1, 8, 128>}, {transform_indices = @transform_3, window_bounds = array<i64: 1, 16, 32>}, {transform_indices = @transform_4, window_bounds = array<i64: 1, 8, 8>}, {transform_indices = @transform_5, window_bounds = array<i64: 1, 16, 16>}, {transform_indices = @transform_6, window_bounds = array<i64: 1, 8, 16>}]} {
    %c0_i32 = arith.constant 0 : i32
    %0 = arith.cmpi eq, %arg1, %c0_i32 : i32
    %1 = arith.extui %0 : i1 to i32
    %c0_i32_0 = arith.constant 0 : i32
    %2 = arith.cmpi ne, %1, %c0_i32_0 : i32
    scf.if %2 {
      %c0_39 = arith.constant 0 : index
      %c0_40 = arith.constant 0 : index
      %c0_41 = arith.constant 0 : index
      %117 = vector.load %arg2[%c0_39, %c0_40, %c0_41] : memref<1x8x16xf32, #tpu.memory_space<vmem>>, vector<1x8x16xf32>
      %c0_42 = arith.constant 0 : index
      %c0_43 = arith.constant 0 : index
      %c0_44 = arith.constant 0 : index
      %118 = vector.load %arg8[%c0_42, %c0_43, %c0_44] : memref<1x8x16xf32, #tpu.memory_space<vmem>>, vector<1x8x16xf32>
      tpu.vector_store %arg8[%c0_42, %c0_43, %c0_44], %117 {strides = array<i32>} : memref<1x8x16xf32, #tpu.memory_space<vmem>>, vector<1x8x16xf32>,
    } else {
    }
    %c0 = arith.constant 0 : index
    %c0_1 = arith.constant 0 : index
    %c0_2 = arith.constant 0 : index
    %3 = vector.load %arg3[%c0, %c0_1, %c0_2] : memref<1x8x32xf32, #tpu.memory_space<vmem>>, vector<1x8x32xf32>
    %4 = vector.shape_cast %3 : vector<1x8x32xf32> to vector<8x32xf32>
    %5 = vector.extract_strided_slice %4 {offsets = [0, 0], sizes = [1, 16], strides = [1, 1]} : vector<8x32xf32> to vector<1x16xf32>
    %6 = vector.shape_cast %5 : vector<1x16xf32> to vector<16xf32>
    %7 = vector.extract_strided_slice %4 {offsets = [1, 0], sizes = [1, 16], strides = [1, 1]} : vector<8x32xf32> to vector<1x16xf32>
    %8 = vector.shape_cast %7 : vector<1x16xf32> to vector<16xf32>
    %9 = vector.extract_strided_slice %4 {offsets = [2, 0], sizes = [1, 32], strides = [1, 1]} : vector<8x32xf32> to vector<1x32xf32>
    %10 = vector.shape_cast %9 : vector<1x32xf32> to vector<32xf32>
    %11 = vector.extract_strided_slice %4 {offsets = [3, 0], sizes = [1, 16], strides = [1, 1]} : vector<8x32xf32> to vector<1x16xf32>
    %12 = vector.shape_cast %11 : vector<1x16xf32> to vector<16xf32>
    %13 = vector.extract_strided_slice %4 {offsets = [4, 0], sizes = [1, 16], strides = [1, 1]} : vector<8x32xf32> to vector<1x16xf32>
    %14 = vector.shape_cast %13 : vector<1x16xf32> to vector<16xf32>
    %15 = vector.extract_strided_slice %4 {offsets = [5, 0], sizes = [1, 16], strides = [1, 1]} : vector<8x32xf32> to vector<1x16xf32>
    %16 = vector.shape_cast %15 : vector<1x16xf32> to vector<16xf32>
    %c0_3 = arith.constant 0 : index
    %c0_4 = arith.constant 0 : index
    %c0_5 = arith.constant 0 : index
    %17 = vector.load %arg4[%c0_3, %c0_4, %c0_5] : memref<1x8x128xf32, #tpu.memory_space<vmem>>, vector<1x8x1xf32>
    %18 = vector.shape_cast %17 : vector<1x8x1xf32> to vector<8x1xf32>
    %c0_6 = arith.constant 0 : index
    %c0_7 = arith.constant 0 : index
    %c0_8 = arith.constant 0 : index
    %19 = vector.load %arg8[%c0_6, %c0_7, %c0_8] : memref<1x8x16xf32, #tpu.memory_space<vmem>>, vector<1x8x16xf32>
    %20 = vector.shape_cast %19 : vector<1x8x16xf32> to vector<8x16xf32>
    %cst = arith.constant dense<0.000000e+00> : vector<8xf32>
    %21 = vector.multi_reduction <add>, %20, %cst [1] : vector<8x16xf32> to vector<8xf32>
    %22 = vector.shape_cast %21 : vector<8xf32> to vector<8x1xf32>
    %cst_9 = arith.constant 1.600000e+01 : f32
    %23 = vector.broadcast %cst_9 : f32 to vector<8x1xf32>
    %24 = arith.divf %22, %23 : vector<8x1xf32>
    %25 = arith.mulf %20, %20 : vector<8x16xf32>
    %cst_10 = arith.constant dense<0.000000e+00> : vector<8xf32>
    %26 = vector.multi_reduction <add>, %25, %cst_10 [1] : vector<8x16xf32> to vector<8xf32>
    %27 = vector.shape_cast %26 : vector<8xf32> to vector<8x1xf32>
    %cst_11 = arith.constant 1.600000e+01 : f32
    %28 = vector.broadcast %cst_11 : f32 to vector<8x1xf32>
    %29 = arith.divf %27, %28 : vector<8x1xf32>
    %30 = arith.mulf %24, %24 : vector<8x1xf32>
    %31 = arith.subf %29, %30 : vector<8x1xf32>
    %cst_12 = arith.constant 0.000000e+00 : f32
    %32 = vector.broadcast %cst_12 : f32 to vector<8x1xf32>
    %33 = arith.maximumf %31, %32 : vector<8x1xf32>
    %34 = vector.broadcast %24 : vector<8x1xf32> to vector<8x16xf32>
    %35 = arith.subf %20, %34 : vector<8x16xf32>
    %cst_13 = arith.constant 9.99999974E-6 : f32
    %36 = vector.broadcast %cst_13 : f32 to vector<8x1xf32>
    %37 = arith.addf %33, %36 : vector<8x1xf32>
    %38 = math.rsqrt %37 : vector<8x1xf32>
    %39 = vector.broadcast %38 : vector<8x1xf32> to vector<8x16xf32>
    %40 = arith.mulf %35, %39 : vector<8x16xf32>
    %41 = vector.shape_cast %6 : vector<16xf32> to vector<1x16xf32>
    %42 = vector.broadcast %41 : vector<1x16xf32> to vector<8x16xf32>
    %43 = arith.mulf %40, %42 : vector<8x16xf32>
    %44 = vector.shape_cast %8 : vector<16xf32> to vector<1x16xf32>
    %45 = vector.broadcast %44 : vector<1x16xf32> to vector<8x16xf32>
    %46 = arith.addf %43, %45 : vector<8x16xf32>
    %47 = arith.truncf %46 : vector<8x16xf32> to vector<8x16xbf16>
    %c0_14 = arith.constant 0 : index
    %c0_15 = arith.constant 0 : index
    %c0_16 = arith.constant 0 : index
    %48 = vector.load %arg5[%c0_14, %c0_15, %c0_16] : memref<1x16x32xbf16, #tpu.memory_space<vmem>>, vector<1x16x32xbf16>
    %49 = vector.shape_cast %48 : vector<1x16x32xbf16> to vector<16x32xbf16>
    %cst_17 = arith.constant dense<0.000000e+00> : vector<8x32xf32>
    %50 = tpu.matmul %47, %49, %cst_17 {dimension_numbers = #tpu.dot_dimension_numbers<[1], [0], [0], [1], [0, 0, 1, 1], [], []>} : vector<8x16xbf16>, vector<16x32xbf16>, vector<8x32xf32> -> vector<8x32xf32>
    %51 = vector.shape_cast %10 : vector<32xf32> to vector<1x32xf32>
    %52 = vector.broadcast %51 : vector<1x32xf32> to vector<8x32xf32>
    %53 = arith.addf %50, %52 : vector<8x32xf32>
    %54 = arith.mulf %53, %53 : vector<8x32xf32>
    %55 = arith.mulf %53, %54 : vector<8x32xf32>
    %cst_18 = arith.constant 4.471500e-02 : f32
    %56 = vector.broadcast %cst_18 : f32 to vector<8x32xf32>
    %57 = arith.mulf %56, %55 : vector<8x32xf32>
    %58 = arith.addf %53, %57 : vector<8x32xf32>
    %cst_19 = arith.constant 0.797884583 : f32
    %59 = vector.broadcast %cst_19 : f32 to vector<8x32xf32>
    %60 = arith.mulf %59, %58 : vector<8x32xf32>
    %61 = math.tanh %60 : vector<8x32xf32>
    %cst_20 = arith.constant 1.000000e+00 : f32
    %62 = vector.broadcast %cst_20 : f32 to vector<8x32xf32>
    %63 = arith.addf %62, %61 : vector<8x32xf32>
    %cst_21 = arith.constant 5.000000e-01 : f32
    %64 = vector.broadcast %cst_21 : f32 to vector<8x32xf32>
    %65 = arith.mulf %64, %63 : vector<8x32xf32>
    %66 = arith.mulf %53, %65 : vector<8x32xf32>
    %67 = vector.extract_strided_slice %66 {offsets = [0, 0], sizes = [8, 16], strides = [1, 1]} : vector<8x32xf32> to vector<8x16xf32>
    %68 = vector.shape_cast %67 : vector<8x16xf32> to vector<1x8x16xf32>
    %69 = vector.extract_strided_slice %66 {offsets = [0, 16], sizes = [8, 16], strides = [1, 1]} : vector<8x32xf32> to vector<8x16xf32>
    %cst_22 = arith.constant dense<0.000000e+00> : vector<8xf32>
    %70 = vector.multi_reduction <add>, %69, %cst_22 [1] : vector<8x16xf32> to vector<8xf32>
    %71 = vector.shape_cast %70 : vector<8xf32> to vector<8x1xf32>
    %cst_23 = arith.constant 1.600000e+01 : f32
    %72 = vector.broadcast %cst_23 : f32 to vector<8x1xf32>
    %73 = arith.divf %71, %72 : vector<8x1xf32>
    %74 = arith.mulf %69, %69 : vector<8x16xf32>
    %cst_24 = arith.constant dense<0.000000e+00> : vector<8xf32>
    %75 = vector.multi_reduction <add>, %74, %cst_24 [1] : vector<8x16xf32> to vector<8xf32>
    %76 = vector.shape_cast %75 : vector<8xf32> to vector<8x1xf32>
    %cst_25 = arith.constant 1.600000e+01 : f32
    %77 = vector.broadcast %cst_25 : f32 to vector<8x1xf32>
    %78 = arith.divf %76, %77 : vector<8x1xf32>
    %79 = arith.mulf %73, %73 : vector<8x1xf32>
    %80 = arith.subf %78, %79 : vector<8x1xf32>
    %cst_26 = arith.constant 0.000000e+00 : f32
    %81 = vector.broadcast %cst_26 : f32 to vector<8x1xf32>
    %82 = arith.maximumf %80, %81 : vector<8x1xf32>
    %83 = vector.broadcast %73 : vector<8x1xf32> to vector<8x16xf32>
    %84 = arith.subf %69, %83 : vector<8x16xf32>
    %cst_27 = arith.constant 9.99999974E-6 : f32
    %85 = vector.broadcast %cst_27 : f32 to vector<8x1xf32>
    %86 = arith.addf %82, %85 : vector<8x1xf32>
    %87 = math.rsqrt %86 : vector<8x1xf32>
    %88 = vector.broadcast %87 : vector<8x1xf32> to vector<8x16xf32>
    %89 = arith.mulf %84, %88 : vector<8x16xf32>
    %90 = vector.shape_cast %12 : vector<16xf32> to vector<1x16xf32>
    %91 = vector.broadcast %90 : vector<1x16xf32> to vector<8x16xf32>
    %92 = arith.mulf %89, %91 : vector<8x16xf32>
    %93 = vector.shape_cast %14 : vector<16xf32> to vector<1x16xf32>
    %94 = vector.broadcast %93 : vector<1x16xf32> to vector<8x16xf32>
    %95 = arith.addf %92, %94 : vector<8x16xf32>
    %96 = arith.truncf %95 : vector<8x16xf32> to vector<8x16xbf16>
    %97 = vector.shape_cast %96 : vector<8x16xbf16> to vector<1x8x16xbf16>
    %c0_28 = arith.constant 0 : index
    %c0_29 = arith.constant 0 : index
    %c0_30 = arith.constant 0 : index
    %98 = vector.load %arg6[%c0_28, %c0_29, %c0_30] : memref<1x8x8xbf16, #tpu.memory_space<vmem>>, vector<1x8x8xbf16>
    %99 = vector.shape_cast %98 : vector<1x8x8xbf16> to vector<8x8xbf16>
    %100 = vector.shape_cast %99 : vector<8x8xbf16> to vector<1x8x8xbf16>
    "tpu.trace_start"() <{level = 10 : i32, message = "blk,bkh->blh"}> : () -> ()
    %cst_31 = arith.constant dense<0.000000e+00> : vector<1x8x16xf32>
    %101 = tpu.matmul %100, %97, %cst_31 {dimension_numbers = #tpu.dot_dimension_numbers<[2], [1], [1], [2], [0, 0, 0, 1, 1, 2], [0], [0]>} : vector<1x8x8xbf16>, vector<1x8x16xbf16>, vector<1x8x16xf32> -> vector<1x8x16xf32>
    "tpu.trace_stop"() : () -> ()
    %102 = vector.shape_cast %18 : vector<8x1xf32> to vector<1x8x1xf32>
    %103 = vector.broadcast %102 : vector<1x8x1xf32> to vector<1x8x16xf32>
    %104 = arith.addf %101, %103 : vector<1x8x16xf32>
    %105 = arith.mulf %68, %104 : vector<1x8x16xf32>
    %106 = vector.shape_cast %105 : vector<1x8x16xf32> to vector<8x16xf32>
    %107 = arith.truncf %106 : vector<8x16xf32> to vector<8x16xbf16>
    %c0_32 = arith.constant 0 : index
    %c0_33 = arith.constant 0 : index
    %c0_34 = arith.constant 0 : index
    %108 = vector.load %arg7[%c0_32, %c0_33, %c0_34] : memref<1x16x16xbf16, #tpu.memory_space<vmem>>, vector<1x16x16xbf16>
    %109 = vector.shape_cast %108 : vector<1x16x16xbf16> to vector<16x16xbf16>
    %cst_35 = arith.constant dense<0.000000e+00> : vector<8x16xf32>
    %110 = tpu.matmul %107, %109, %cst_35 {dimension_numbers = #tpu.dot_dimension_numbers<[1], [0], [0], [1], [0, 0, 1, 1], [], []>} : vector<8x16xbf16>, vector<16x16xbf16>, vector<8x16xf32> -> vector<8x16xf32>
    %111 = vector.shape_cast %16 : vector<16xf32> to vector<1x16xf32>
    %112 = vector.broadcast %111 : vector<1x16xf32> to vector<8x16xf32>
    %113 = arith.addf %110, %112 : vector<8x16xf32>
    %114 = arith.addf %113, %20 : vector<8x16xf32>
    %115 = vector.shape_cast %114 : vector<8x16xf32> to vector<1x8x16xf32>
    %c0_36 = arith.constant 0 : index
    %c0_37 = arith.constant 0 : index
    %c0_38 = arith.constant 0 : index
    %116 = vector.load %arg8[%c0_36, %c0_37, %c0_38] : memref<1x8x16xf32, #tpu.memory_space<vmem>>, vector<1x8x16xf32>
    tpu.vector_store %arg8[%c0_36, %c0_37, %c0_38], %115 {strides = array<i32>} : memref<1x8x16xf32, #tpu.memory_space<vmem>>, vector<1x8x16xf32>,
    return
  }
  func.func @transform_0(%arg0: i32, %arg1: i32) -> (i32, i32, i32) {
    %c0_i32 = arith.constant 0 : i32
    %c0_i32_0 = arith.constant 0 : i32
    %c0_i32_1 = arith.constant 0 : i32
    return %arg0, %c0_i32, %c0_i32_0 : i32, i32, i32
  }
  func.func @transform_1(%arg0: i32, %arg1: i32) -> (i32, i32, i32) {
    %c0_i32 = arith.constant 0 : i32
    %c0_i32_0 = arith.constant 0 : i32
    %c0_i32_1 = arith.constant 0 : i32
    return %arg1, %c0_i32, %c0_i32_0 : i32, i32, i32
  }
  func.func @transform_2(%arg0: i32, %arg1: i32) -> (i32, i32, i32) {
    %c0_i32 = arith.constant 0 : i32
    %c0_i32_0 = arith.constant 0 : i32
    %c0_i32_1 = arith.constant 0 : i32
    return %arg1, %c0_i32, %c0_i32_0 : i32, i32, i32
  }
  func.func @transform_3(%arg0: i32, %arg1: i32) -> (i32, i32, i32) {
    %c0_i32 = arith.constant 0 : i32
    %c0_i32_0 = arith.constant 0 : i32
    %c0_i32_1 = arith.constant 0 : i32
    return %arg1, %c0_i32, %c0_i32_0 : i32, i32, i32
  }
  func.func @transform_4(%arg0: i32, %arg1: i32) -> (i32, i32, i32) {
    %c0_i32 = arith.constant 0 : i32
    %c0_i32_0 = arith.constant 0 : i32
    %c0_i32_1 = arith.constant 0 : i32
    return %arg1, %c0_i32, %c0_i32_0 : i32, i32, i32
  }
  func.func @transform_5(%arg0: i32, %arg1: i32) -> (i32, i32, i32) {
    %c0_i32 = arith.constant 0 : i32
    %c0_i32_0 = arith.constant 0 : i32
    %c0_i32_1 = arith.constant 0 : i32
    return %arg1, %c0_i32, %c0_i32_0 : i32, i32, i32
  }
  func.func @transform_6(%arg0: i32, %arg1: i32) -> (i32, i32, i32) {
    %c0_i32 = arith.constant 0 : i32
    %c0_i32_0 = arith.constant 0 : i32
    %c0_i32_1 = arith.constant 0 : i32
    return %arg0, %c0_i32, %c0_i32_0 : i32, i32, i32
  }
}

</mosaic_0001>

<llo_original>
// kernel: tpu_custom_call.1
$region0: #{tpu_custom_call.1}
  #allocation0 [shape = 'u32[]', space=smem, size = 0x4, offset = 0x4, fixed_abs, tag = 'smem constant byte address 0x4 - core index']
  #allocation1 [shape = 'u32[144,128]{1,0:T(1,128)}', space=vmem, size = 0x12000, scoped, tag = 'internal scratch']
  %s0 = inlined_call_operand.hbm [shape: f32[2,8,16], index: 0, kind: input, shape index: {}]
  %s1 = inlined_call_operand.hbm [shape: f32[2,8,32], index: 1, kind: input, shape index: {}]
  %s2 = inlined_call_operand.hbm [shape: f32[2,8,128], index: 2, kind: input, shape index: {}]
  %s3 = inlined_call_operand.hbm [shape: bf16[2,16,32], index: 3, kind: input, shape index: {}]
  %s4 = inlined_call_operand.hbm [shape: bf16[2,8,8], index: 4, kind: input, shape index: {}]
  %s5 = inlined_call_operand.hbm [shape: bf16[2,16,16], index: 5, kind: input, shape index: {}]
  %s6 = inlined_call_operand.hbm [shape: f32[2,8,16], index: 6, kind: output, shape index: {}]
  %s7 = sld [smem:[#allocation0]]
  $region85: #{tpu_custom_call.1} parent=0
    _
  %s9 = ssub.s32 1, %s7
  %s10 = scalar_select 0, %s9, %s7
  $region1: #{tpu_custom_call.1} parent=0
    #allocation2 [shape = 'u8[8192]{0}', space=vmem, size = 0x2000, scoped, tag = 'input window, operand 0']
    #allocation3 [shape = 's32[2]{0}', space=sflag, size = 0x8, scoped, tag = 'scoped memory for tpu_custom_call.1']
    #allocation4 [shape = 's32[2]{0}', space=sflag, size = 0x8, scoped, tag = 'scoped memory for tpu_custom_call.1']
    #allocation5 [shape = 'u8[8192]{0}', space=vmem, size = 0x2000, scoped, tag = 'input window, operand 1']
    #allocation6 [shape = 's32[2]{0}', space=sflag, size = 0x8, scoped, tag = 'scoped memory for tpu_custom_call.1']
    #allocation7 [shape = 'u8[8192]{0}', space=vmem, size = 0x2000, scoped, tag = 'input window, operand 2']
    #allocation8 [shape = 'u8[8192]{0}', space=vmem, size = 0x2000, scoped, tag = 'input window, operand 3']
    #allocation9 [shape = 's32[2]{0}', space=sflag, size = 0x8, scoped, tag = 'scoped memory for tpu_custom_call.1']
    #allocation10 [shape = 'u8[4096]{0}', space=vmem, size = 0x1000, scoped, tag = 'input window, operand 4']
    #allocation11 [shape = 'u8[8192]{0}', space=vmem, size = 0x2000, scoped, tag = 'input window, operand 5']
    #allocation12 [shape = 's32[2]{0}', space=sflag, size = 0x8, scoped, tag = 'scoped memory for tpu_custom_call.1']
    #allocation13 [shape = 'u8[8192]{0}', space=vmem, size = 0x2000, scoped, tag = 'output window, operand 0']
    %11 = vsyncpa [#allocation3], 0
    %s12 = scalar_lea.sflag [#allocation3], 1
    %13 = vsyncpa %s12, 0
    %14 = vsyncpa [#allocation6], 0
    %s15 = scalar_lea.sflag [#allocation6], 1
    %16 = vsyncpa %s15, 0
    %17 = vsyncpa [#allocation9], 0
    %s18 = scalar_lea.sflag [#allocation9], 1
    %19 = vsyncpa %s18, 0
    %20 = vsyncpa [#allocation12], 0
    %s21 = scalar_lea.sflag [#allocation12], 1
    %22 = vsyncpa %s21, 0
    %23 = vsyncpa [#allocation4], 0
    %s24 = scalar_lea.sflag [#allocation4], 1
    %25 = vsyncpa %s24, 0
    loop: start=0, step=1, limit=6
    $region2: #{tpu_custom_call.1} parent=1 // loop_pre_header
      _
    $region3: #{tpu_custom_call.1} parent=1 // loop_header
      %s27 = sphi 0, %s31
      %p28 = scmp.ge.s32.totalorder %s27, 6
      %s34 = sphi 0, %s46
      %s35 = sphi 0, %s42
      %s36 = sphi 0, %s34
      %s37 = sphi 0, %s35
      %s38 = sphi 0, %s36
      %s39 = sphi 0, %s37
      %s49 = sphi 0, %s51
      %s52 = sphi 0, %s49
      %s53 = sphi 0, %s52
      %s69 = sphi 0, %s53
      %s75 = sphi 0, %s77
      %s78 = sphi 0, %s75
      %s79 = sphi 0, %s78
      %s95 = sphi 0, %s79
      %s101 = sphi 0, %s103
      %s104 = sphi 0, %s101
      %s105 = sphi 0, %s104
      %s121 = sphi 0, %s105
      %s127 = sphi 0, %s129
      %s130 = sphi 0, %s127
      %s131 = sphi 0, %s130
      %s147 = sphi 0, %s131
      %s153 = sphi 0, %s155
      %s156 = sphi 0, %s153
      %s157 = sphi 0, %s156
      %s173 = sphi 0, %s157
      %s179 = sphi 0, %s181
      %s182 = sphi 0, %s179
      %s183 = sphi 0, %s182
      %s199 = sphi 0, %s183
      %s205 = sphi 0, %s207
      %s208 = sphi 0, %s205
      %s209 = sphi 0, %s208
      %s225 = sphi 0, %s209
    $region4: #{tpu_custom_call.1} parent=1 // loop_header_branch
      %30 = sbr.rel (%p28) target = $region8
    $region5: #{tpu_custom_call.1} parent=1 // loop_body
      %s32 = ssub.s32 %s27, 1
      %s33 = ssub.s32 %s27, 2
      %s40 = sadd.s32 1, %s35
      %p41 = scmp.ge.s32.totalorder %s40, 2
      %s42 = scalar_select %p41, 0, %s40
      %s43 = sadd.s32 1, %s34
      %s44 = scalar_select %p41, %s43, %s34
      %p45 = scmp.ge.s32.totalorder %s44, 2
      %s46 = scalar_select %p45, 0, %s44
      %s47 = ssub.s32 %s34, %s46
      %p48 = scmp.eq.s32.totalorder %s47, 0
      %s50 = sadd.s32 %s49, 1
      %s51 = scalar_select %p48, %s49, %s50
      %p54 = pneg %p48
      %p55 = scmp.eq.s32.totalorder %s27, 3
      %p56 = por %p54, %p55
      %p57 = scmp.ne.s32.totalorder %s49, %s52
      %p58 = scmp.eq.s32.totalorder %s27, 0
      %p59 = por %p57, %p58
      %p60 = scmp.ne.s32.totalorder %s49, %s52
      %p61 = scmp.eq.s32.totalorder %s32, 3
      %p62 = por %p60, %p61
      %p63 = scmp.ne.s32.totalorder %s52, %s53
      %p64 = scmp.eq.s32.totalorder %s32, 0
      %p65 = por %p63, %p64
      %p66 = scmp.ne.s32.totalorder %s52, %s53
      %p67 = scmp.eq.s32.totalorder %s33, 3
      %p68 = por %p66, %p67
      %p70 = scmp.ne.s32.totalorder %s53, %s69
      %p71 = scmp.eq.s32.totalorder %s33, 0
      %p72 = por %p70, %p71
      %s73 = ssub.s32 %s35, %s42
      %p74 = scmp.eq.s32.totalorder %s73, 0
      %s76 = sadd.s32 %s75, 1
      %s77 = scalar_select %p74, %s75, %s76
      %p80 = pneg %p74
      %p81 = scmp.eq.s32.totalorder %s27, 3
      %p82 = por %p80, %p81
      %p83 = scmp.ne.s32.totalorder %s75, %s78
      %p84 = scmp.eq.s32.totalorder %s27, 0
      %p85 = por %p83, %p84
      %p86 = scmp.ne.s32.totalorder %s75, %s78
      %p87 = scmp.eq.s32.totalorder %s32, 3
      %p88 = por %p86, %p87
      %p89 = scmp.ne.s32.totalorder %s78, %s79
      %p90 = scmp.eq.s32.totalorder %s32, 0
      %p91 = por %p89, %p90
      %p92 = scmp.ne.s32.totalorder %s78, %s79
      %p93 = scmp.eq.s32.totalorder %s33, 3
      %p94 = por %p92, %p93
      %p96 = scmp.ne.s32.totalorder %s79, %s95
      %p97 = scmp.eq.s32.totalorder %s33, 0
      %p98 = por %p96, %p97
      %s99 = ssub.s32 %s35, %s42
      %p100 = scmp.eq.s32.totalorder %s99, 0
      %s102 = sadd.s32 %s101, 1
      %s103 = scalar_select %p100, %s101, %s102
      %p106 = pneg %p100
      %p107 = scmp.eq.s32.totalorder %s27, 3
      %p108 = por %p106, %p107
      %p109 = scmp.ne.s32.totalorder %s101, %s104
      %p110 = scmp.eq.s32.totalorder %s27, 0
      %p111 = por %p109, %p110
      %p112 = scmp.ne.s32.totalorder %s101, %s104
      %p113 = scmp.eq.s32.totalorder %s32, 3
      %p114 = por %p112, %p113
      %p115 = scmp.ne.s32.totalorder %s104, %s105
      %p116 = scmp.eq.s32.totalorder %s32, 0
      %p117 = por %p115, %p116
      %p118 = scmp.ne.s32.totalorder %s104, %s105
      %p119 = scmp.eq.s32.totalorder %s33, 3
      %p120 = por %p118, %p119
      %p122 = scmp.ne.s32.totalorder %s105, %s121
      %p123 = scmp.eq.s32.totalorder %s33, 0
      %p124 = por %p122, %p123
      %s125 = ssub.s32 %s35, %s42
      %p126 = scmp.eq.s32.totalorder %s125, 0
      %s128 = sadd.s32 %s127, 1
      %s129 = scalar_select %p126, %s127, %s128
      %p132 = pneg %p126
      %p133 = scmp.eq.s32.totalorder %s27, 3
      %p134 = por %p132, %p133
      %p135 = scmp.ne.s32.totalorder %s127, %s130
      %p136 = scmp.eq.s32.totalorder %s27, 0
      %p137 = por %p135, %p136
      %p138 = scmp.ne.s32.totalorder %s127, %s130
      %p139 = scmp.eq.s32.totalorder %s32, 3
      %p140 = por %p138, %p139
      %p141 = scmp.ne.s32.totalorder %s130, %s131
      %p142 = scmp.eq.s32.totalorder %s32, 0
      %p143 = por %p141, %p142
      %p144 = scmp.ne.s32.totalorder %s130, %s131
      %p145 = scmp.eq.s32.totalorder %s33, 3
      %p146 = por %p144, %p145
      %p148 = scmp.ne.s32.totalorder %s131, %s147
      %p149 = scmp.eq.s32.totalorder %s33, 0
      %p150 = por %p148, %p149
      %s151 = ssub.s32 %s35, %s42
      %p152 = scmp.eq.s32.totalorder %s151, 0
      %s154 = sadd.s32 %s153, 1
      %s155 = scalar_select %p152, %s153, %s154
      %p158 = pneg %p152
      %p159 = scmp.eq.s32.totalorder %s27, 3
      %p160 = por %p158, %p159
      %p161 = scmp.ne.s32.totalorder %s153, %s156
      %p162 = scmp.eq.s32.totalorder %s27, 0
      %p163 = por %p161, %p162
      %p164 = scmp.ne.s32.totalorder %s153, %s156
      %p165 = scmp.eq.s32.totalorder %s32, 3
      %p166 = por %p164, %p165
      %p167 = scmp.ne.s32.totalorder %s156, %s157
      %p168 = scmp.eq.s32.totalorder %s32, 0
      %p169 = por %p167, %p168
      %p170 = scmp.ne.s32.totalorder %s156, %s157
      %p171 = scmp.eq.s32.totalorder %s33, 3
      %p172 = por %p170, %p171
      %p174 = scmp.ne.s32.totalorder %s157, %s173
      %p175 = scmp.eq.s32.totalorder %s33, 0
      %p176 = por %p174, %p175
      %s177 = ssub.s32 %s35, %s42
      %p178 = scmp.eq.s32.totalorder %s177, 0
      %s180 = sadd.s32 %s179, 1
      %s181 = scalar_select %p178, %s179, %s180
      %p184 = pneg %p178
      %p185 = scmp.eq.s32.totalorder %s27, 3
      %p186 = por %p184, %p185
      %p187 = scmp.ne.s32.totalorder %s179, %s182
      %p188 = scmp.eq.s32.totalorder %s27, 0
      %p189 = por %p187, %p188
      %p190 = scmp.ne.s32.totalorder %s179, %s182
      %p191 = scmp.eq.s32.totalorder %s32, 3
      %p192 = por %p190, %p191
      %p193 = scmp.ne.s32.totalorder %s182, %s183
      %p194 = scmp.eq.s32.totalorder %s32, 0
      %p195 = por %p193, %p194
      %p196 = scmp.ne.s32.totalorder %s182, %s183
      %p197 = scmp.eq.s32.totalorder %s33, 3
      %p198 = por %p196, %p197
      %p200 = scmp.ne.s32.totalorder %s183, %s199
      %p201 = scmp.eq.s32.totalorder %s33, 0
      %p202 = por %p200, %p201
      %s203 = ssub.s32 %s34, %s46
      %p204 = scmp.eq.s32.totalorder %s203, 0
      %s206 = sadd.s32 %s205, 1
      %s207 = scalar_select %p204, %s205, %s206
      %p210 = pneg %p204
      %p211 = scmp.eq.s32.totalorder %s27, 3
      %p212 = por %p210, %p211
      %p213 = scmp.ne.s32.totalorder %s205, %s208
      %p214 = scmp.eq.s32.totalorder %s27, 0
      %p215 = por %p213, %p214
      %p216 = scmp.ne.s32.totalorder %s205, %s208
      %p217 = scmp.eq.s32.totalorder %s32, 3
      %p218 = por %p216, %p217
      %p219 = scmp.ne.s32.totalorder %s208, %s209
      %p220 = scmp.eq.s32.totalorder %s32, 0
      %p221 = por %p219, %p220
      %p222 = scmp.ne.s32.totalorder %s208, %s209
      %p223 = scmp.eq.s32.totalorder %s33, 3
      %p224 = por %p222, %p223
      %p226 = scmp.ne.s32.totalorder %s209, %s225
      %p227 = scmp.eq.s32.totalorder %s33, 0
      %p228 = por %p226, %p227
      %p229 = scmp.le.s32.totalorder 1, %s27
      %p230 = scmp.lt.s32.totalorder %s27, 5
      %p231 = pnand %p229, %p230
      %p232 = pneg %p231
      // Predicated region
      $region9: #{tpu_custom_call.1} parent=5 // pred_check
        _
      $region10: #{tpu_custom_call.1} parent=5 // pred_check_branch
        %234 = sbr.rel (%p231) target = $region12
      $region11: #{tpu_custom_call.1} parent=5 // pred_region
        %s235 = ssub.s32 %s27, 1
      $region12: #{tpu_custom_call.1} parent=5 // pred_fallthru
        _
      %p236 = scmp.lt.s32.totalorder %s27, 4
      // Predicated region
      $region13: #{tpu_custom_call.1} parent=5 // pred_check
        %p237 = pneg %p236
      $region14: #{tpu_custom_call.1} parent=5 // pred_check_branch
        %239 = sbr.rel (%p237) target = $region16
      $region15: #{tpu_custom_call.1} parent=5 // pred_region
        // Predicated region
        $region17: #{tpu_custom_call.1} parent=15 // pred_check
          %p240 = pneg %p59
        $region18: #{tpu_custom_call.1} parent=15 // pred_check_branch
          %242 = sbr.rel (%p240) target = $region20
        $region19: #{tpu_custom_call.1} parent=15 // pred_region
          %s243 = sand.u32 %s49, 1
          %s244 = scalar_lea.sflag [#allocation3], %s243
          %s245 = sand.u32 %s49, 1
          %s246 = smul.addr %s245, 8
          %s247 = scalar_lea.vmem [#allocation2], %s246
          %s249 = ssub.s32 128, 128
          %250 = vsyncadd %s244, %s249
          %s251 = smul.addr %s34, 128
          %s252 = scalar_lea.hbm %s0, %s251
          %s254 = sshll.u32 %s247, 4
          %s255 = int_to_ptr.vmem [resolvable:$true] %s254
          %257 = dma.hbm_to_vmem [thread:$0]  %s252, 128, %s255, %s244
        $region20: #{tpu_custom_call.1} parent=15 // pred_fallthru
          _
        // Predicated region
        $region21: #{tpu_custom_call.1} parent=15 // pred_check
          %p258 = pneg %p85
        $region22: #{tpu_custom_call.1} parent=15 // pred_check_branch
          %260 = sbr.rel (%p258) target = $region24
        $region23: #{tpu_custom_call.1} parent=15 // pred_region
          %s261 = sand.u32 %s27, 1
          %s262 = scalar_lea.sflag [#allocation6], %s261
          %s263 = sand.u32 %s75, 1
          %s264 = smul.addr %s263, 8
          %s265 = scalar_lea.vmem [#allocation5], %s264
          %s267 = ssub.s32 128, 128
          %268 = vsyncadd %s262, %s267
          %s269 = smul.addr %s35, 128
          %s270 = scalar_lea.hbm %s1, %s269
          %s272 = sshll.u32 %s265, 4
          %s273 = int_to_ptr.vmem [resolvable:$true] %s272
          %275 = dma.hbm_to_vmem [thread:$0]  %s270, 128, %s273, %s262
        $region24: #{tpu_custom_call.1} parent=15 // pred_fallthru
          _
        // Predicated region
        $region25: #{tpu_custom_call.1} parent=15 // pred_check
          %p276 = pneg %p111
        $region26: #{tpu_custom_call.1} parent=15 // pred_check_branch
          %278 = sbr.rel (%p276) target = $region28
        $region27: #{tpu_custom_call.1} parent=15 // pred_region
          %s279 = sand.u32 %s27, 1
          %s280 = scalar_lea.sflag [#allocation6], %s279
          %s281 = sand.u32 %s101, 1
          %s282 = smul.addr %s281, 8
          %s283 = scalar_lea.vmem [#allocation7], %s282
          %s285 = ssub.s32 128, 128
          %286 = vsyncadd %s280, %s285
          %s287 = smul.addr %s35, 128
          %s288 = scalar_lea.hbm %s2, %s287
          %s290 = sshll.u32 %s283, 4
          %s291 = int_to_ptr.vmem [resolvable:$true] %s290
          %293 = dma.hbm_to_vmem [thread:$0]  %s288, 128, %s291, %s280
        $region28: #{tpu_custom_call.1} parent=15 // pred_fallthru
          _
        // Predicated region
        $region29: #{tpu_custom_call.1} parent=15 // pred_check
          %p294 = pneg %p137
        $region30: #{tpu_custom_call.1} parent=15 // pred_check_branch
          %296 = sbr.rel (%p294) target = $region32
        $region31: #{tpu_custom_call.1} parent=15 // pred_region
          %s297 = sand.u32 %s27, 1
          %s298 = scalar_lea.sflag [#allocation9], %s297
          %s299 = sand.u32 %s127, 1
          %s300 = smul.addr %s299, 8
          %s301 = scalar_lea.vmem [#allocation8], %s300
          %s303 = ssub.s32 128, 128
          %304 = vsyncadd %s298, %s303
          %s305 = smul.addr %s35, 2
          %s306 = smul.addr %s305, 64
          %s307 = scalar_lea.hbm %s3, %s306
          %s308 = sshll.u32 %s301, 4
          %s309 = int_to_ptr.vmem [resolvable:$true] %s308
          %314 = dma.hbm_to_vmem [thread:$0]  %s307, 128, %s309, %s298, 64, 64, 4
        $region32: #{tpu_custom_call.1} parent=15 // pred_fallthru
          _
        // Predicated region
        $region33: #{tpu_custom_call.1} parent=15 // pred_check
          %p315 = pneg %p163
        $region34: #{tpu_custom_call.1} parent=15 // pred_check_branch
          %317 = sbr.rel (%p315) target = $region36
        $region35: #{tpu_custom_call.1} parent=15 // pred_region
          %s318 = sand.u32 %s27, 1
          %s319 = scalar_lea.sflag [#allocation9], %s318
          %s320 = sand.u32 %s153, 1
          %s321 = smul.addr %s320, 4
          %s322 = scalar_lea.vmem [#allocation10], %s321
          %s324 = ssub.s32 64, 64
          %325 = vsyncadd %s319, %s324
          %s326 = smul.addr %s35, 64
          %s327 = scalar_lea.hbm %s4, %s326
          %s329 = sshll.u32 %s322, 4
          %s330 = int_to_ptr.vmem [resolvable:$true] %s329
          %332 = dma.hbm_to_vmem [thread:$0]  %s327, 64, %s330, %s319
        $region36: #{tpu_custom_call.1} parent=15 // pred_fallthru
          _
        // Predicated region
        $region37: #{tpu_custom_call.1} parent=15 // pred_check
          %p333 = pneg %p189
        $region38: #{tpu_custom_call.1} parent=15 // pred_check_branch
          %335 = sbr.rel (%p333) target = $region40
        $region39: #{tpu_custom_call.1} parent=15 // pred_region
          %s336 = sand.u32 %s179, 1
          %s337 = scalar_lea.sflag [#allocation12], %s336
          %s338 = sand.u32 %s179, 1
          %s339 = smul.addr %s338, 8
          %s340 = scalar_lea.vmem [#allocation11], %s339
          %s342 = ssub.s32 128, 128
          %343 = vsyncadd %s337, %s342
          %s344 = smul.addr %s35, 2
          %s345 = smul.addr %s344, 64
          %s346 = scalar_lea.hbm %s5, %s345
          %s347 = sshll.u32 %s340, 4
          %s348 = int_to_ptr.vmem [resolvable:$true] %s347
          %353 = dma.hbm_to_vmem [thread:$0]  %s346, 128, %s348, %s337, 64, 64, 4
        $region40: #{tpu_custom_call.1} parent=15 // pred_fallthru
          _
      $region16: #{tpu_custom_call.1} parent=5 // pred_fallthru
        _
      %p354 = scmp.le.s32.totalorder 1, %s27
      %p355 = scmp.lt.s32.totalorder %s27, 5
      %p356 = pnand %p354, %p355
      %p357 = pneg %p356
      // Predicated region
      $region41: #{tpu_custom_call.1} parent=5 // pred_check
        _
      $region42: #{tpu_custom_call.1} parent=5 // pred_check_branch
        %359 = sbr.rel (%p356) target = $region44
      $region43: #{tpu_custom_call.1} parent=5 // pred_region
        %s360 = ssub.s32 %s27, 1
        %s361 = sand.u32 %s52, 1
        %s362 = scalar_lea.sflag [#allocation3], %s361
        %s363 = sand.u32 %s52, 1
        %s364 = smul.addr %s363, 8
        %s365 = scalar_lea.vmem [#allocation2], %s364
        // Predicated region
        $region45: #{tpu_custom_call.1} parent=43 // pred_check
          %p366 = pneg %p65
        $region46: #{tpu_custom_call.1} parent=43 // pred_check_branch
          %368 = sbr.rel (%p366) target = $region48
        $region47: #{tpu_custom_call.1} parent=43 // pred_region
          %369 = dma.done %s362, 128
        $region48: #{tpu_custom_call.1} parent=43 // pred_fallthru
          _
        %s370 = sand.u32 %s32, 1
        %s371 = scalar_lea.sflag [#allocation6], %s370
        %s372 = sand.u32 %s78, 1
        %s373 = smul.addr %s372, 8
        %s374 = scalar_lea.vmem [#allocation5], %s373
        // Predicated region
        $region49: #{tpu_custom_call.1} parent=43 // pred_check
          %p375 = pneg %p91
        $region50: #{tpu_custom_call.1} parent=43 // pred_check_branch
          %377 = sbr.rel (%p375) target = $region52
        $region51: #{tpu_custom_call.1} parent=43 // pred_region
          %378 = dma.done %s371, 128
        $region52: #{tpu_custom_call.1} parent=43 // pred_fallthru
          _
        %s379 = sand.u32 %s32, 1
        %s380 = scalar_lea.sflag [#allocation6], %s379
        %s381 = sand.u32 %s104, 1
        %s382 = smul.addr %s381, 8
        %s383 = scalar_lea.vmem [#allocation7], %s382
        // Predicated region
        $region53: #{tpu_custom_call.1} parent=43 // pred_check
          %p384 = pneg %p117
        $region54: #{tpu_custom_call.1} parent=43 // pred_check_branch
          %386 = sbr.rel (%p384) target = $region56
        $region55: #{tpu_custom_call.1} parent=43 // pred_region
          %387 = dma.done %s380, 128
        $region56: #{tpu_custom_call.1} parent=43 // pred_fallthru
          _
        %s388 = sand.u32 %s32, 1
        %s389 = scalar_lea.sflag [#allocation9], %s388
        %s390 = sand.u32 %s130, 1
        %s391 = smul.addr %s390, 8
        %s392 = scalar_lea.vmem [#allocation8], %s391
        // Predicated region
        $region57: #{tpu_custom_call.1} parent=43 // pred_check
          %p393 = pneg %p143
        $region58: #{tpu_custom_call.1} parent=43 // pred_check_branch
          %395 = sbr.rel (%p393) target = $region60
        $region59: #{tpu_custom_call.1} parent=43 // pred_region
          %396 = dma.done %s389, 128
        $region60: #{tpu_custom_call.1} parent=43 // pred_fallthru
          _
        %s397 = sand.u32 %s32, 1
        %s398 = scalar_lea.sflag [#allocation9], %s397
        %s399 = sand.u32 %s156, 1
        %s400 = smul.addr %s399, 4
        %s401 = scalar_lea.vmem [#allocation10], %s400
        // Predicated region
        $region61: #{tpu_custom_call.1} parent=43 // pred_check
          %p402 = pneg %p169
        $region62: #{tpu_custom_call.1} parent=43 // pred_check_branch
          %404 = sbr.rel (%p402) target = $region64
        $region63: #{tpu_custom_call.1} parent=43 // pred_region
          %405 = dma.done %s398, 64
        $region64: #{tpu_custom_call.1} parent=43 // pred_fallthru
          _
        %s406 = sand.u32 %s182, 1
        %s407 = scalar_lea.sflag [#allocation12], %s406
        %s408 = sand.u32 %s182, 1
        %s409 = smul.addr %s408, 8
        %s410 = scalar_lea.vmem [#allocation11], %s409
        // Predicated region
        $region65: #{tpu_custom_call.1} parent=43 // pred_check
          %p411 = pneg %p195
        $region66: #{tpu_custom_call.1} parent=43 // pred_check_branch
          %413 = sbr.rel (%p411) target = $region68
        $region67: #{tpu_custom_call.1} parent=43 // pred_region
          %414 = dma.done %s407, 128
        $region68: #{tpu_custom_call.1} parent=43 // pred_fallthru
          _
        %s415 = sand.u32 %s52, 1
        %s416 = scalar_lea.sflag [#allocation3], %s415
        %s417 = sand.u32 %s52, 1
        %s418 = smul.addr %s417, 8
        %s419 = scalar_lea.vmem [#allocation2], %s418
        %p420 = pneg %p65
        %p421 = pneg %p62
        %s422 = sand.u32 %s32, 1
        %s423 = scalar_lea.sflag [#allocation6], %s422
        %s424 = sand.u32 %s78, 1
        %s425 = smul.addr %s424, 8
        %s426 = scalar_lea.vmem [#allocation5], %s425
        %p427 = pneg %p91
        %p428 = pneg %p88
        %s429 = sand.u32 %s32, 1
        %s430 = scalar_lea.sflag [#allocation6], %s429
        %s431 = sand.u32 %s104, 1
        %s432 = smul.addr %s431, 8
        %s433 = scalar_lea.vmem [#allocation7], %s432
        %p434 = pneg %p117
        %p435 = pneg %p114
        %s436 = sand.u32 %s32, 1
        %s437 = scalar_lea.sflag [#allocation9], %s436
        %s438 = sand.u32 %s130, 1
        %s439 = smul.addr %s438, 8
        %s440 = scalar_lea.vmem [#allocation8], %s439
        %p441 = pneg %p143
        %p442 = pneg %p140
        %s443 = sand.u32 %s32, 1
        %s444 = scalar_lea.sflag [#allocation9], %s443
        %s445 = sand.u32 %s156, 1
        %s446 = smul.addr %s445, 4
        %s447 = scalar_lea.vmem [#allocation10], %s446
        %p448 = pneg %p169
        %p449 = pneg %p166
        %s450 = sand.u32 %s182, 1
        %s451 = scalar_lea.sflag [#allocation12], %s450
        %s452 = sand.u32 %s182, 1
        %s453 = smul.addr %s452, 8
        %s454 = scalar_lea.vmem [#allocation11], %s453
        %p455 = pneg %p195
        %p456 = pneg %p192
        %p457 = pneg %p221
        %p458 = pneg %p218
        %s459 = sand.u32 %s208, 1
        %s460 = scalar_lea.sflag [#allocation4], %s459
        %s461 = sand.u32 %s208, 1
        %s462 = smul.addr %s461, 8
        %s463 = scalar_lea.vmem [#allocation13], %s462
        %p465 = scmp.eq.s32.totalorder %s37, 0
        // Predicated region
        $region69: #{tpu_custom_call.1} parent=43 // pred_check
          %p466 = pneg %p465
        $region70: #{tpu_custom_call.1} parent=43 // pred_check_branch
          %468 = sbr.rel (%p466) target = $region72
        $region71: #{tpu_custom_call.1} parent=43 // pred_region
          %v469 = vld [vmem:[%s365] sm:$0xff]
          %vm470 = vcmask 130048
          %471 = vst.msk [vmem:[%s463] sm:$0xff] %vm470, %v469
        $region72: #{tpu_custom_call.1} parent=43 // pred_fallthru
          _
        %v472 = vld [vmem:[%s374] sm:$0xff]
        %v473 = vld [vmem:[%s383] sm:$0xff]
        %v474 = vld [vmem:[%s463] sm:$0xff]
        %vm475 = vcmask 130048
        %v476 = vsel %vm475, %v474, 0.0
        %477 = vadd.xlane.f32.xlu0 %v476
        %v478 = vpop.xlane.xlu0 %477
        %v479 = vrcp.pop 16.0
        %v480 = vmul.f32 %v478, %v479
        %v481 = vmul.f32 %v474, %v474
        %v482 = vsel %vm475, %v481, 0.0
        %483 = vadd.xlane.f32.xlu0 %v482
        %v484 = vpop.xlane.xlu0 %483
        %v485 = vmul.f32 %v484, %v479
        %v486 = vmul.f32 %v480, %v480
        %v487 = vsub.f32 %v485, %v486
        %v488 = vmax.f32 %v487, 0.0
        %v489 = vsub.f32 %v474, %v480
        %v490 = vadd.f32 %v488, 1e-05
        %v491 = vrsqrt.pop %v490
        %v492 = vmul.f32 %v489, %v491
        %v493 = vlaneseq
        %v494 = vshrl.u32 %v493, 7
        %v495 = vsub.s32 0, %v494
        %v496 = vrot.slane %v472, %v495
        %v497 = vmul.f32 %v492, %v496
        %v498 = vlaneseq
        %v499 = vshrl.u32 %v498, 7
        %v500 = vsub.s32 1, %v499
        %v501 = vrot.slane %v472, %v500
        %v502 = vadd.f32 %v497, %v501
        %v503 = vpack.c.bf16 %v502, %v502
        %v504 = vld [vmem:[%s392] sm:$0xf]
        %v505 = vld [vmem:[%s392 + $0x4] sm:$0xf]
        %v506 = vlaneseq
        %v507 = vshrl.u32 %v506, 7
        %v508 = vsub.s32 2, %v507
        %v509 = vrot.slane %v472, %v508
        %v512 = vunpack.c.l.b16 %v504
        %v513 = vunpack.c.l.b16 %v505
        %v514 = vpack.c.b16 %v513, %v512
        %v517 = vsel %vm475, %v503, 0
        %519 = vmatprep.subr.bf16.mxu0 0
        %520 = vmatpush1.bf16.msra.mxu0 0
        %521 = vmatprep.subr.bf16.mxu0 0
        %522 = vmatpush1.bf16.msra.mxu0 0
        %523 = vmatprep.subr.bf16.mxu0 0
        %524 = vmatpush1.bf16.msra.mxu0 0
        %525 = vmatprep.subr.bf16.mxu0 0
        %526 = vmatpush1.bf16.msra.mxu0 0
        %527 = vmatprep.subr.bf16.mxu0 0
        %528 = vmatpush1.bf16.msra.mxu0 0
        %529 = vmatprep.subr.bf16.mxu0 0
        %530 = vmatpush1.bf16.msra.mxu0 0
        %531 = vmatprep.subr.bf16.mxu0 0
        %532 = vmatpush1.bf16.msra.mxu0 0
        %533 = vmatprep.subr.bf16.mxu0 0
        %534 = vmatpush1.bf16.msra.mxu0 %v514
        %535 = vmatprep.subr.bf16.mxu0 0
        %536 = vmatpush2.bf16.msra.mxu0 0
        %537 = vmatprep.subr.bf16.mxu0 0
        %538 = vmatpush2.bf16.msra.mxu0 0
        %539 = vmatprep.subr.bf16.mxu0 0
        %540 = vmatpush2.bf16.msra.mxu0 0
        %541 = vmatprep.subr.bf16.mxu0 0
        %542 = vmatpush2.bf16.msra.mxu0 0
        %543 = vmatprep.subr.bf16.mxu0 0
        %544 = vmatpush2.bf16.msra.mxu0 0
        %545 = vmatprep.subr.bf16.mxu0 0
        %546 = vmatpush2.bf16.msra.mxu0 0
        %547 = vmatprep.subr.bf16.mxu0 0
        %548 = vmatpush2.bf16.msra.mxu0 0
        %549 = vmatprep.subr.bf16.mxu0 0
        %550 = vmatpush2.bf16.msra.mxu0 0
        %551 = vmatprep.mubr.bf16.mxu0 0
        %552 = vmatmul.mubr.bf16.gmra.mxu0 %v517
        %v553 = vpop.f32.mrf.mxu0
        %v554 = vadd.f32 %v509, %v553
        %v555 = vpop.f32.mrf.mxu0
        %v556 = vpop.f32.mrf.mxu0
        %v557 = vpop.f32.mrf.mxu0
        %558 = vdwg.mxu0
        %v559 = vmul.f32 %v554, %v554
        %v560 = vmul.f32 %v554, %v559
        %v561 = vmul.f32 %v560, 0.044715
        %v562 = vadd.f32 %v554, %v561
        %v563 = vmul.f32 %v562, 0.7978846
        %v564 = vtanh.pop %v563
        %v565 = vadd.f32 %v564, 1.0
        %v566 = vmul.f32 %v565, 0.5
        %v567 = vmul.f32 %v554, %v566
        %569 = vrot.lane.b32.xlu0 %v567, 112
        %v570 = vpop.permute.xlu0 %569
        %v572 = vsel %vm475, %v570, 0.0
        %573 = vadd.xlane.f32.xlu0 %v572
        %v574 = vpop.xlane.xlu0 %573
        %v575 = vmul.f32 %v574, %v479
        %v576 = vmul.f32 %v567, %v567
        %578 = vrot.lane.b32.xlu0 %v576, 112
        %v579 = vpop.permute.xlu0 %578
        %v581 = vsel %vm475, %v579, 0.0
        %582 = vadd.xlane.f32.xlu0 %v581
        %v583 = vpop.xlane.xlu0 %582
        %v584 = vmul.f32 %v583, %v479
        %v585 = vmul.f32 %v575, %v575
        %v586 = vsub.f32 %v584, %v585
        %v587 = vmax.f32 %v586, 0.0
        %v588 = vsub.f32 %v567, %v575
        %v589 = vadd.f32 %v587, 1e-05
        %v590 = vrsqrt.pop %v589
        %v591 = vmul.f32 %v588, %v590
        %v592 = vlaneseq
        %v593 = vshrl.u32 %v592, 7
        %v594 = vsub.s32 3, %v593
        %v595 = vrot.slane %v472, %v594
        %597 = vrot.lane.b32.xlu0 %v595, 16
        %v598 = vpop.permute.xlu0 %597
        %v600 = vmul.f32 %v591, %v598
        %v601 = vlaneseq
        %v602 = vshrl.u32 %v601, 7
        %v603 = vsub.s32 4, %v602
        %v604 = vrot.slane %v472, %v603
        %606 = vrot.lane.b32.xlu0 %v604, 16
        %v607 = vpop.permute.xlu0 %606
        %v609 = vadd.f32 %v600, %v607
        %v610 = vpack.c.bf16 %v609, %v609
        %v611 = vld [vmem:[%s401] sm:$0xf]
        %613 = vset.pattern.permute.xlu0 0
        %614 = vperm.xlu0 %613, %v473
        %v615 = vpop.permute.xlu0 %614
        %618 = vrot.lane.b32.xlu0 %v610, 112
        %v619 = vpop.permute.xlu0 %618
        %vm620 = vcmask 64512
        %v622 = vsel %vm620, %v611, 0
        %vm624 = vcmask 1043456
        %v626 = vsel %vm624, %v619, 0
        %628 = vmatprep.subr.bf16.mxu0 0
        %629 = vmatpush1.bf16.msra.mxu0 0
        %630 = vmatprep.subr.bf16.mxu0 0
        %631 = vmatpush1.bf16.msra.mxu0 0
        %632 = vmatprep.subr.bf16.mxu0 0
        %633 = vmatpush1.bf16.msra.mxu0 0
        %634 = vmatprep.subr.bf16.mxu0 0
        %635 = vmatpush1.bf16.msra.mxu0 0
        %636 = vmatprep.subr.bf16.mxu0 0
        %637 = vmatpush1.bf16.msra.mxu0 0
        %638 = vmatprep.subr.bf16.mxu0 0
        %639 = vmatpush1.bf16.msra.mxu0 0
        %640 = vmatprep.subr.bf16.mxu0 0
        %641 = vmatpush1.bf16.msra.mxu0 0
        %642 = vmatprep.subr.bf16.mxu0 0
        %643 = vmatpush1.bf16.msra.mxu0 %v626
        %644 = vmatprep.subr.bf16.mxu0 0
        %645 = vmatpush2.bf16.msra.mxu0 0
        %646 = vmatprep.subr.bf16.mxu0 0
        %647 = vmatpush2.bf16.msra.mxu0 0
        %648 = vmatprep.subr.bf16.mxu0 0
        %649 = vmatpush2.bf16.msra.mxu0 0
        %650 = vmatprep.subr.bf16.mxu0 0
        %651 = vmatpush2.bf16.msra.mxu0 0
        %652 = vmatprep.subr.bf16.mxu0 0
        %653 = vmatpush2.bf16.msra.mxu0 0
        %654 = vmatprep.subr.bf16.mxu0 0
        %655 = vmatpush2.bf16.msra.mxu0 0
        %656 = vmatprep.subr.bf16.mxu0 0
        %657 = vmatpush2.bf16.msra.mxu0 0
        %658 = vmatprep.subr.bf16.mxu0 0
        %659 = vmatpush2.bf16.msra.mxu0 0
        %660 = vmatprep.mubr.bf16.mxu0 0
        %661 = vmatmul.mubr.bf16.gmra.mxu0 %v622
        %v662 = vpop.f32.mrf.mxu0
        %v663 = vadd.f32 %v615, %v662
        %v664 = vpop.f32.mrf.mxu0
        %v665 = vpop.f32.mrf.mxu0
        %v666 = vpop.f32.mrf.mxu0
        %667 = vdwg.mxu0
        %v668 = vmul.f32 %v567, %v663
        %v669 = vpack.c.bf16 %v668, %v668
        %v670 = vld [vmem:[%s410] sm:$0xf]
        %v671 = vld [vmem:[%s410 + $0x4] sm:$0xf]
        %v672 = vlaneseq
        %v673 = vshrl.u32 %v672, 7
        %v674 = vsub.s32 5, %v673
        %v675 = vrot.slane %v472, %v674
        %v678 = vunpack.c.l.b16 %v670
        %v679 = vunpack.c.l.b16 %v671
        %v680 = vpack.c.b16 %v679, %v678
        %v683 = vsel %vm475, %v669, 0
        %685 = vmatprep.subr.bf16.mxu0 0
        %686 = vmatpush1.bf16.msra.mxu0 0
        %687 = vmatprep.subr.bf16.mxu0 0
        %688 = vmatpush1.bf16.msra.mxu0 0
        %689 = vmatprep.subr.bf16.mxu0 0
        %690 = vmatpush1.bf16.msra.mxu0 0
        %691 = vmatprep.subr.bf16.mxu0 0
        %692 = vmatpush1.bf16.msra.mxu0 0
        %693 = vmatprep.subr.bf16.mxu0 0
        %694 = vmatpush1.bf16.msra.mxu0 0
        %695 = vmatprep.subr.bf16.mxu0 0
        %696 = vmatpush1.bf16.msra.mxu0 0
        %697 = vmatprep.subr.bf16.mxu0 0
        %698 = vmatpush1.bf16.msra.mxu0 0
        %699 = vmatprep.subr.bf16.mxu0 0
        %700 = vmatpush1.bf16.msra.mxu0 %v680
        %701 = vmatprep.subr.bf16.mxu0 0
        %702 = vmatpush2.bf16.msra.mxu0 0
        %703 = vmatprep.subr.bf16.mxu0 0
        %704 = vmatpush2.bf16.msra.mxu0 0
        %705 = vmatprep.subr.bf16.mxu0 0
        %706 = vmatpush2.bf16.msra.mxu0 0
        %707 = vmatprep.subr.bf16.mxu0 0
        %708 = vmatpush2.bf16.msra.mxu0 0
        %709 = vmatprep.subr.bf16.mxu0 0
        %710 = vmatpush2.bf16.msra.mxu0 0
        %711 = vmatprep.subr.bf16.mxu0 0
        %712 = vmatpush2.bf16.msra.mxu0 0
        %713 = vmatprep.subr.bf16.mxu0 0
        %714 = vmatpush2.bf16.msra.mxu0 0
        %715 = vmatprep.subr.bf16.mxu0 0
        %716 = vmatpush2.bf16.msra.mxu0 0
        %717 = vmatprep.mubr.bf16.mxu0 0
        %718 = vmatmul.mubr.bf16.gmra.mxu0 %v683
        %v719 = vpop.f32.mrf.mxu0
        %v720 = vadd.f32 %v675, %v719
        %v721 = vpop.f32.mrf.mxu0
        %v722 = vpop.f32.mrf.mxu0
        %v723 = vpop.f32.mrf.mxu0
        %724 = vdwg.mxu0
        %v725 = vadd.f32 %v720, %v474
        %726 = vst.msk [vmem:[%s463] sm:$0xff] %vm475, %v725
        %s727 = sand.u32 %s208, 1
        %s728 = scalar_lea.sflag [#allocation4], %s727
        %s729 = sand.u32 %s208, 1
        %s730 = smul.addr %s729, 8
        %s731 = scalar_lea.vmem [#allocation13], %s730
        // Predicated region
        $region73: #{tpu_custom_call.1} parent=43 // pred_check
          %p732 = pneg %p218
        $region74: #{tpu_custom_call.1} parent=43 // pred_check_branch
          %734 = sbr.rel (%p732) target = $region76
        $region75: #{tpu_custom_call.1} parent=43 // pred_region
          %s736 = ssub.s32 128, 128
          %737 = vsyncadd %s728, %s736
          %s738 = smul.addr %s36, 128
          %s739 = scalar_lea.hbm %s6, %s738
          %s741 = sshll.u32 %s731, 4
          %s742 = int_to_ptr.vmem [resolvable:$true] %s741
          %744 = dma.vmem_to_hbm [thread:$0]  %s742, 128, %s739, %s728
        $region76: #{tpu_custom_call.1} parent=43 // pred_fallthru
          _
      $region44: #{tpu_custom_call.1} parent=5 // pred_fallthru
        _
      %p745 = scmp.le.s32.totalorder 2, %s27
      // Predicated region
      $region77: #{tpu_custom_call.1} parent=5 // pred_check
        %p746 = pneg %p745
      $region78: #{tpu_custom_call.1} parent=5 // pred_check_branch
        %748 = sbr.rel (%p746) target = $region80
      $region79: #{tpu_custom_call.1} parent=5 // pred_region
        %s749 = ssub.s32 %s27, 2
        // Predicated region
        $region81: #{tpu_custom_call.1} parent=79 // pred_check
          %p750 = pneg %p224
        $region82: #{tpu_custom_call.1} parent=79 // pred_check_branch
          %752 = sbr.rel (%p750) target = $region84
        $region83: #{tpu_custom_call.1} parent=79 // pred_region
          %s753 = sand.u32 %s209, 1
          %s754 = scalar_lea.sflag [#allocation4], %s753
          %s755 = sand.u32 %s209, 1
          %s756 = smul.addr %s755, 8
          %s757 = scalar_lea.vmem [#allocation13], %s756
          %758 = dma.done %s754, 128
        $region84: #{tpu_custom_call.1} parent=79 // pred_fallthru
          _
      $region80: #{tpu_custom_call.1} parent=5 // pred_fallthru
        _
    $region6: #{tpu_custom_call.1} parent=1 // loop_footer
      %s31 = sadd.s32 1, %s27
    $region7: #{tpu_custom_call.1} parent=1 // loop_footer_branch
      %26 = sbr.rel target = $region3
    $region8: #{tpu_custom_call.1} parent=1 // loop_exit
      _
    %759 = vsyncpa [#allocation3], 1
    %s760 = scalar_lea.sflag [#allocation3], 1
    %761 = vsyncpa %s760, 1
    %762 = vsyncpa [#allocation6], 1
    %s763 = scalar_lea.sflag [#allocation6], 1
    %764 = vsyncpa %s763, 1
    %765 = vsyncpa [#allocation9], 1
    %s766 = scalar_lea.sflag [#allocation9], 1
    %767 = vsyncpa %s766, 1
    %768 = vsyncpa [#allocation12], 1
    %s769 = scalar_lea.sflag [#allocation12], 1
    %770 = vsyncpa %s769, 1
    %771 = vsyncpa [#allocation4], 1
    %s772 = scalar_lea.sflag [#allocation4], 1
    %773 = vsyncpa %s772, 1

</llo_original>
